<compile_context>
chip_gen: v7x
topology: tpu7x:2x2x1
jax: 0.10.0
libtpu: 0.0.40
codegen_flags: <defaults>
</compile_context>

<pallas_src>
import jax
import jax.numpy as jnp
from jax.experimental import pallas as pl
from jax.experimental.pallas import tpu as pltpu


def _single_pass_kernel(x_ref, w_ref, b_ref, o_ref):
    # x_ref: (TB, K), w_ref: (K, P), b_ref: (1, P), o_ref: (TB, P)
    acc = jnp.dot(x_ref[...], w_ref[...], preferred_element_type=jnp.float32)
    o_ref[...] = (acc + b_ref[...].astype(jnp.float32)).astype(o_ref.dtype)


def _reduction_kernel(x_ref, w_ref, b_ref, o_ref, acc_ref):
    # x_ref: (TB, TK), w_ref: (TK, P), b_ref: (1, P), o_ref: (TB, P),
    # acc_ref: (TB, P) f32 scratch persisting across the reduction grid axis.
    k = pl.program_id(1)

    @pl.when(k == 0)
    def _init():
        acc_ref[...] = jnp.zeros_like(acc_ref)

    acc_ref[...] += jnp.dot(x_ref[...], w_ref[...],
                            preferred_element_type=jnp.float32)

    @pl.when(k == pl.num_programs(1) - 1)
    def _finalize():
        o_ref[...] = (acc_ref[...] + b_ref[...].astype(jnp.float32)
                      ).astype(o_ref.dtype)


def _pick_tiles(B, K, itemsize, target_bytes):
    """Pick (TB, TK) respecting the (8,128)/full-dim block rule & VMEM budget."""
    min_rows = min(B, 8)
    # Prefer the full K (no reduction axis, weight stays resident) unless even
    # an 8-row tile blows the per-buffer budget.  K not a multiple of 128 also
    # forces the full-dim block (last-dim rule).
    if K % 128 != 0 or min_rows * K * itemsize <= target_bytes:
        TK = K
    else:
        TK = max(128, (target_bytes // (min_rows * itemsize)) // 128 * 128)
        while K % TK:
            TK -= 128
    if B <= 8:
        TB = B
    else:
        max_rows = max(8, (target_bytes // (TK * itemsize)) // 8 * 8)
        TB = min(B // 8 * 8, max_rows)
        # v7x megacore: keep >= 2 steps on the parallel batch axis.
        if B >= 16:
            TB = min(TB, max(8, (B // 2) // 8 * 8))
        # Prefer a batch tile that divides B exactly (avoid padded last-tile DMA).
        t = TB
        while t >= 8 and B % t:
            t -= 8
        if t >= 8:
            TB = t
    return TB, TK


def linear_probe(x, weight, bias, *, tb=None, tk=None,
                 target_bytes=4 * 1024 * 1024):
    """x: [B, P, D], weight: [P, D], bias: [P]  ->  [B, P]"""
    B, P, D = x.shape
    assert weight.shape == (P, D)
    assert bias.shape == (P,)
    K = P * D

    # Block-diagonal weight  W_bd[p*D + d, q] = weight[p, d] * (p == q).
    # Built once in the wrapper (~P*D*P elements); cast to x.dtype so the MXU
    # consumes it natively (bf16 products are exact in the f32 accumulator).
    eye = jnp.eye(P, dtype=jnp.float32)
    w_bd = (jnp.einsum("pd,pq->pdq", weight.astype(jnp.float32), eye)
            .reshape(K, P).astype(x.dtype))
    bias2d = bias.reshape(1, P)
    x2 = x.reshape(B, K)            # free: same row-major memory layout

    TB, TK = _pick_tiles(B, K, x.dtype.itemsize, target_bytes)
    if tb is not None:
        TB = tb
    if tk is not None:
        TK = tk
    assert TK == K or (TK % 128 == 0 and K % TK == 0), "bad K tile"
    assert TB == B or TB % 8 == 0, "bad B tile"

    num_b = pl.cdiv(B, TB)
    num_k = K // TK

    # Explicit scoped-VMEM limit: double-buffered x & w tiles + acc/out/bias,
    # with 2x headroom, clamped to 48 MiB (v7x has only 64 MiB/TC physical).
    itemsize = x.dtype.itemsize
    need = (2 * (TB * TK + TK * P) * itemsize
            + TB * P * (4 + 2 * itemsize) + 8 * P * 4)
    vmem_limit = int(min(48 << 20, max(32 << 20, 2 * need)))

    out_shape = jax.ShapeDtypeStruct((B, P), x.dtype)

    if num_k == 1:
        return pl.pallas_call(
            _single_pass_kernel,
            out_shape=out_shape,
            grid_spec=pltpu.PrefetchScalarGridSpec(
                num_scalar_prefetch=0,
                grid=(num_b,),
                in_specs=[
                    pl.BlockSpec((TB, K), lambda i: (i, 0)),
                    pl.BlockSpec((K, P), lambda i: (0, 0)),
                    pl.BlockSpec((1, P), lambda i: (0, 0)),
                ],
                out_specs=pl.BlockSpec((TB, P), lambda i: (i, 0)),
            ),
            compiler_params=pltpu.CompilerParams(
                dimension_semantics=("parallel",),
                vmem_limit_bytes=vmem_limit,
            ),
        )(x2, w_bd, bias2d)

    return pl.pallas_call(
        _reduction_kernel,
        out_shape=out_shape,
        grid_spec=pltpu.PrefetchScalarGridSpec(
            num_scalar_prefetch=0,
            grid=(num_b, num_k),
            in_specs=[
                pl.BlockSpec((TB, TK), lambda i, k: (i, k)),
                pl.BlockSpec((TK, P), lambda i, k: (k, 0)),
                pl.BlockSpec((1, P), lambda i, k: (0, 0)),
            ],
            out_specs=pl.BlockSpec((TB, P), lambda i, k: (i, 0)),
            scratch_shapes=[pltpu.VMEM((TB, P), jnp.float32)],
        ),
        compiler_params=pltpu.CompilerParams(
            dimension_semantics=("parallel", "arbitrary"),
            vmem_limit_bytes=vmem_limit,
        ),
    )(x2, w_bd, bias2d)


def _reference(x, weight, bias):
    xf = x.astype(jnp.float32)
    wf = weight.astype(jnp.float32)
    bf = bias.astype(jnp.float32)
    return jnp.einsum("bpd,pd->bp", xf, wf,
                      precision=jax.lax.Precision.HIGHEST) + bf


def _run_case(key, B, P, D, dtype, tb=None, tk=None, atol=1e-5, rtol=1e-5):
    kx, kw, kb = jax.random.split(key, 3)
    x = jax.random.normal(kx, (B, P, D), dtype=jnp.float32).astype(dtype)
    # torch.nn.Linear-style init: U(-1/sqrt(n_embd), 1/sqrt(n_embd))
    bound = 1.0 / jnp.sqrt(jnp.float32(D))
    weight = jax.random.uniform(kw, (P, D), minval=-bound, maxval=bound,
                                dtype=jnp.float32).astype(dtype)
    bias = jax.random.uniform(kb, (P,), minval=-bound, maxval=bound,
                              dtype=jnp.float32).astype(dtype)

    out = linear_probe(x, weight, bias, tb=tb, tk=tk)
    out = jax.block_until_ready(out)

    ref = _reference(x, weight, bias)
    assert out.shape == (B, P)
    assert jnp.allclose(out.astype(jnp.float32), ref, atol=atol, rtol=rtol), \
        f"mismatch vs reference (B={B}, P={P}, D={D}, dtype={dtype})"


if __name__ == "__main__":
    root = jax.random.PRNGKey(0)
    k0, k1, k2, k3, k4 = jax.random.split(root, 5)

    # Toy shape consistent with the module: batch=2, probe_dim=8, n_embd=32.
    _run_case(k0, B=2, P=8, D=32, dtype=jnp.float32, atol=5e-3, rtol=5e-3)

    # Force the K-reduction grid + f32 scratch accumulator path (bf16 inputs).
    _run_case(k1, B=32, P=8, D=1024, dtype=jnp.bfloat16, tb=16, tk=2048,
              atol=2e-2, rtol=2e-2)

    # Default tiling: single-pass MXU path, TB=16 (dense bf16 sublane packing).
    _run_case(k2, B=32, P=8, D=1024, dtype=jnp.bfloat16,
              atol=2e-2, rtol=2e-2)

    # K not a multiple of 128 -> full-dim blocks (last-dim exemption).
    _run_case(k3, B=5, P=8, D=40, dtype=jnp.float32, atol=5e-3, rtol=5e-3)

    # B not a multiple of the batch tile -> padded last tile, masked out store.
    _run_case(k4, B=20, P=8, D=256, dtype=jnp.bfloat16,
              atol=2e-2, rtol=2e-2)

    print("KERNEL_OK")
</pallas_src>

<mosaic_0001>
module attributes {stable_mosaic.version = 11 : i64} {
  func.func @_single_pass_kernel(%arg0: i32, %arg1: memref<2x256xf32, #tpu.memory_space<vmem>>, %arg2: memref<256x8xf32, #tpu.memory_space<vmem>>, %arg3: memref<1x8xf32, #tpu.memory_space<vmem>>, %arg4: memref<2x8xf32, #tpu.memory_space<vmem>>) attributes {dimension_semantics = [#tpu.dimension_semantics<parallel>], iteration_bounds = array<i64: 1>, scalar_prefetch = 0 : i64, scratch_operands = 0 : i64, tpu.core_type = #tpu.core_type<tc>, window_params = [{transform_indices = @transform_0, window_bounds = array<i64: 2, 256>}, {pipeline_mode = #tpu.pipeline_mode<synchronous>, transform_indices = @transform_1, window_bounds = array<i64: 256, 8>}, {pipeline_mode = #tpu.pipeline_mode<synchronous>, transform_indices = @transform_2, window_bounds = array<i64: 1, 8>}, {transform_indices = @transform_3, window_bounds = array<i64: 2, 8>}]} {
    %c0 = arith.constant 0 : index
    %c0_0 = arith.constant 0 : index
    %0 = vector.load %arg1[%c0, %c0_0] : memref<2x256xf32, #tpu.memory_space<vmem>>, vector<2x256xf32>
    %c0_1 = arith.constant 0 : index
    %c0_2 = arith.constant 0 : index
    %1 = vector.load %arg2[%c0_1, %c0_2] : memref<256x8xf32, #tpu.memory_space<vmem>>, vector<256x8xf32>
    %cst = arith.constant dense<0.000000e+00> : vector<2x8xf32>
    %2 = tpu.matmul %0, %1, %cst {dimension_numbers = #tpu.dot_dimension_numbers<[1], [0], [0], [1], [0, 0, 1, 1], [], []>} : vector<2x256xf32>, vector<256x8xf32>, vector<2x8xf32> -> vector<2x8xf32>
    %c0_3 = arith.constant 0 : index
    %c0_4 = arith.constant 0 : index
    %3 = vector.load %arg3[%c0_3, %c0_4] : memref<1x8xf32, #tpu.memory_space<vmem>>, vector<1x8xf32>
    %4 = vector.broadcast %3 : vector<1x8xf32> to vector<2x8xf32>
    %5 = arith.addf %2, %4 : vector<2x8xf32>
    %c0_5 = arith.constant 0 : index
    %c0_6 = arith.constant 0 : index
    %6 = vector.load %arg4[%c0_5, %c0_6] : memref<2x8xf32, #tpu.memory_space<vmem>>, vector<2x8xf32>
    tpu.vector_store %arg4[%c0_5, %c0_6], %5 {strides = array<i32>} : memref<2x8xf32, #tpu.memory_space<vmem>>, vector<2x8xf32>,
    return
  }
  func.func @transform_0(%arg0: i32) -> (i32, i32) {
    %c0_i32 = arith.constant 0 : i32
    %c0_i32_0 = arith.constant 0 : i32
    return %arg0, %c0_i32 : i32, i32
  }
  func.func @transform_1(%arg0: i32) -> (i32, i32) {
    %c0_i32 = arith.constant 0 : i32
    %c0_i32_0 = arith.constant 0 : i32
    %c0_i32_1 = arith.constant 0 : i32
    return %c0_i32, %c0_i32_0 : i32, i32
  }
  func.func @transform_2(%arg0: i32) -> (i32, i32) {
    %c0_i32 = arith.constant 0 : i32
    %c0_i32_0 = arith.constant 0 : i32
    %c0_i32_1 = arith.constant 0 : i32
    return %c0_i32, %c0_i32_0 : i32, i32
  }
  func.func @transform_3(%arg0: i32) -> (i32, i32) {
    %c0_i32 = arith.constant 0 : i32
    %c0_i32_0 = arith.constant 0 : i32
    return %arg0, %c0_i32 : i32, i32
  }
}

</mosaic_0001>

<llo_original>
// kernel: tpu_custom_call.1
$region0: #{tpu_custom_call.1}
  #allocation0 [shape = 'u32[]', space=smem, size = 0x4, offset = 0x4, fixed_abs, tag = 'smem constant byte address 0x4 - core index']
  #allocation1 [shape = 'u32[144,128]{1,0:T(1,128)}', space=vmem, size = 0x12000, scoped, tag = 'internal scratch']
  %s0 = inlined_call_operand.vmem [shape: f32[2,256], index: 0, kind: input, shape index: {}]
  %s1 = inlined_call_operand.vmem [shape: f32[256,8], index: 1, kind: input, shape index: {}]
  %s2 = inlined_call_operand.vmem [shape: f32[1,8], index: 2, kind: input, shape index: {}]
  %s3 = inlined_call_operand.hbm [shape: f32[2,8], index: 3, kind: output, shape index: {}]
  %s4 = sld [smem:[#allocation0]]
  $region22: #{tpu_custom_call.1} parent=0
    _
  %s6 = ssub.s32 1, %s4
  %s7 = scalar_select 0, %s6, %s4
  $region1: #{tpu_custom_call.1} parent=0
    #allocation2 [shape = 'u8[1024]{0}', space=vmem, size = 0x400, scoped, tag = 'output window, operand 0, single buffered']
    #allocation3 [shape = 's32[1]{0}', space=sflag, size = 0x4, scoped, tag = 'scoped memory for tpu_custom_call.1']
    %8 = vsyncpa [#allocation3], 0
    // Predicated region
    $region2: #{tpu_custom_call.1} parent=1 // pred_check
      _
    $region3: #{tpu_custom_call.1} parent=1 // pred_check_branch
      %10 = sbr.rel (0) target = $region5
    $region4: #{tpu_custom_call.1} parent=1 // pred_region
      _
    $region5: #{tpu_custom_call.1} parent=1 // pred_fallthru
      _
    // Predicated region
    $region6: #{tpu_custom_call.1} parent=1 // pred_check
      _
    $region7: #{tpu_custom_call.1} parent=1 // pred_check_branch
      %12 = sbr.rel (0) target = $region9
    $region8: #{tpu_custom_call.1} parent=1 // pred_region
      _
    $region9: #{tpu_custom_call.1} parent=1 // pred_fallthru
      _
    // Predicated region
    $region10: #{tpu_custom_call.1} parent=1 // pred_check
      _
    $region11: #{tpu_custom_call.1} parent=1 // pred_check_branch
      %14 = sbr.rel (0) target = $region13
    $region12: #{tpu_custom_call.1} parent=1 // pred_region
      _
    $region13: #{tpu_custom_call.1} parent=1 // pred_fallthru
      _
    %v15 = vld [vmem:[%s0] sm:$0xf]
    %v16 = vld [vmem:[%s1] sm:$0xff]
    %v17 = vld [vmem:[%s1 + $0x8] sm:$0xff]
    %v18 = vld [vmem:[%s1 + $0x10] sm:$0xff]
    %v19 = vld [vmem:[%s1 + $0x18] sm:$0xff]
    %v20 = vld [vmem:[%s1 + $0x20] sm:$0xff]
    %v21 = vld [vmem:[%s1 + $0x28] sm:$0xff]
    %v22 = vld [vmem:[%s1 + $0x30] sm:$0xff]
    %v23 = vld [vmem:[%s1 + $0x38] sm:$0xff]
    %v24 = vld [vmem:[%s1 + $0x40] sm:$0xff]
    %v25 = vld [vmem:[%s1 + $0x48] sm:$0xff]
    %v26 = vld [vmem:[%s1 + $0x50] sm:$0xff]
    %v27 = vld [vmem:[%s1 + $0x58] sm:$0xff]
    %v28 = vld [vmem:[%s1 + $0x60] sm:$0xff]
    %v29 = vld [vmem:[%s1 + $0x68] sm:$0xff]
    %v30 = vld [vmem:[%s1 + $0x70] sm:$0xff]
    %v31 = vld [vmem:[%s1 + $0x78] sm:$0xff]
    %v32 = vld [vmem:[%s1 + $0x80] sm:$0xff]
    %v33 = vld [vmem:[%s1 + $0x88] sm:$0xff]
    %v34 = vld [vmem:[%s1 + $0x90] sm:$0xff]
    %v35 = vld [vmem:[%s1 + $0x98] sm:$0xff]
    %v36 = vld [vmem:[%s1 + $0xa0] sm:$0xff]
    %v37 = vld [vmem:[%s1 + $0xa8] sm:$0xff]
    %v38 = vld [vmem:[%s1 + $0xb0] sm:$0xff]
    %v39 = vld [vmem:[%s1 + $0xb8] sm:$0xff]
    %v40 = vld [vmem:[%s1 + $0xc0] sm:$0xff]
    %v41 = vld [vmem:[%s1 + $0xc8] sm:$0xff]
    %v42 = vld [vmem:[%s1 + $0xd0] sm:$0xff]
    %v43 = vld [vmem:[%s1 + $0xd8] sm:$0xff]
    %v44 = vld [vmem:[%s1 + $0xe0] sm:$0xff]
    %v45 = vld [vmem:[%s1 + $0xe8] sm:$0xff]
    %v46 = vld [vmem:[%s1 + $0xf0] sm:$0xff]
    %v47 = vld [vmem:[%s1 + $0xf8] sm:$0xff]
    %v48 = vld [vmem:[%s2] sm:$0x1]
    %v50 = vlaneseq
    %v51 = vshrl.u32 %v50, 7
    %v52 = vsub.s32 0, %v51
    %v53 = vrot.slane %v48, %v52
    %v57 = vunpack.c.l.s4 1983009808
    %v58 = vunpack.c.0.s8 %v57
    %v59 = vlaneseq
    %v60 = vshrl.u32 %v59, 7
    %v61 = vsub.s32 %v58, %v60
    %v62 = vrot.slane %v15, %v61
    %v63 = vcombine.high %v62, %v62
    %66 = vmatprep.subr.mxu0 0.0
    %67 = vmatpush1.msra.mxu0 %v16
    %68 = vmatprep.subr.mxu0 0.0
    %69 = vmatpush1.msra.mxu0 %v17
    %70 = vmatprep.subr.mxu0 0.0
    %71 = vmatpush1.msra.mxu0 %v18
    %72 = vmatprep.subr.mxu0 0.0
    %73 = vmatpush1.msra.mxu0 %v19
    %74 = vmatprep.subr.mxu0 0.0
    %75 = vmatpush1.msra.mxu0 %v20
    %76 = vmatprep.subr.mxu0 0.0
    %77 = vmatpush1.msra.mxu0 %v21
    %78 = vmatprep.subr.mxu0 0.0
    %79 = vmatpush1.msra.mxu0 %v22
    %80 = vmatprep.subr.mxu0 0.0
    %81 = vmatpush1.msra.mxu0 %v23
    %82 = vmatprep.subr.mxu0 0.0
    %83 = vmatpush1.msra.mxu0 %v24
    %84 = vmatprep.subr.mxu0 0.0
    %85 = vmatpush1.msra.mxu0 %v25
    %86 = vmatprep.subr.mxu0 0.0
    %87 = vmatpush1.msra.mxu0 %v26
    %88 = vmatprep.subr.mxu0 0.0
    %89 = vmatpush1.msra.mxu0 %v27
    %90 = vmatprep.subr.mxu0 0.0
    %91 = vmatpush1.msra.mxu0 %v28
    %92 = vmatprep.subr.mxu0 0.0
    %93 = vmatpush1.msra.mxu0 %v29
    %94 = vmatprep.subr.mxu0 0.0
    %95 = vmatpush1.msra.mxu0 %v30
    %96 = vmatprep.subr.mxu0 0.0
    %97 = vmatpush1.msra.mxu0 %v31
    %98 = vmatprep.subr.mxu0 0.0
    %99 = vmatpush1.msra.mxu0 %v32
    %100 = vmatprep.subr.mxu0 0.0
    %101 = vmatpush1.msra.mxu0 %v33
    %102 = vmatprep.subr.mxu0 0.0
    %103 = vmatpush1.msra.mxu0 %v34
    %104 = vmatprep.subr.mxu0 0.0
    %105 = vmatpush1.msra.mxu0 %v35
    %106 = vmatprep.subr.mxu0 0.0
    %107 = vmatpush1.msra.mxu0 %v36
    %108 = vmatprep.subr.mxu0 0.0
    %109 = vmatpush1.msra.mxu0 %v37
    %110 = vmatprep.subr.mxu0 0.0
    %111 = vmatpush1.msra.mxu0 %v38
    %112 = vmatprep.subr.mxu0 0.0
    %113 = vmatpush1.msra.mxu0 %v39
    %114 = vmatprep.subr.mxu0 0.0
    %115 = vmatpush1.msra.mxu0 %v40
    %116 = vmatprep.subr.mxu0 0.0
    %117 = vmatpush1.msra.mxu0 %v41
    %118 = vmatprep.subr.mxu0 0.0
    %119 = vmatpush1.msra.mxu0 %v42
    %120 = vmatprep.subr.mxu0 0.0
    %121 = vmatpush1.msra.mxu0 %v43
    %122 = vmatprep.subr.mxu0 0.0
    %123 = vmatpush1.msra.mxu0 %v44
    %124 = vmatprep.subr.mxu0 0.0
    %125 = vmatpush1.msra.mxu0 %v45
    %126 = vmatprep.subr.mxu0 0.0
    %127 = vmatpush1.msra.mxu0 %v46
    %128 = vmatprep.subr.mxu0 0.0
    %129 = vmatpush1.msra.mxu0 %v47
    %130 = vmatprep.mubr.f32.mxu0 %v63
    %131 = vmatmul.mubr.f32.gmra.mrb[0].mxu0 %v62
    %v132 = vpop.f32.mrb[0].mxu0
    %v133 = vadd.f32 %v53, %v132
    %v134 = vpop.f32.mrb[0].mxu0
    %135 = vdwg.mxu0
    %vm136 = vcmask 58368
    %137 = vst.msk [vmem:[#allocation2] sm:$0x3] %vm136, %v133
    // Predicated region
    $region14: #{tpu_custom_call.1} parent=1 // pred_check
      _
    $region15: #{tpu_custom_call.1} parent=1 // pred_check_branch
      %139 = sbr.rel (0) target = $region17
    $region16: #{tpu_custom_call.1} parent=1 // pred_region
      %s141 = ssub.s32 32, 32
      %142 = vsyncadd [#allocation3], %s141
      %s144 = sshll.u32 [#allocation2], 4
      %s145 = int_to_ptr.vmem [resolvable:$true] %s144
      %147 = dma.vmem_to_hbm [thread:$0]  %s145, 32, %s3, [#allocation3]
    $region17: #{tpu_custom_call.1} parent=1 // pred_fallthru
      _
    // Predicated region
    $region18: #{tpu_custom_call.1} parent=1 // pred_check
      _
    $region19: #{tpu_custom_call.1} parent=1 // pred_check_branch
      %149 = sbr.rel (0) target = $region21
    $region20: #{tpu_custom_call.1} parent=1 // pred_region
      %150 = dma.done [#allocation3], 32
    $region21: #{tpu_custom_call.1} parent=1 // pred_fallthru
      _
    %151 = vsyncpa [#allocation3], 1

</llo_original>
